<compile_context>
chip_gen: v5e
topology: v5e:2x2
jax: 0.10.0
libtpu: 0.0.40
codegen_flags: <defaults>
</compile_context>

<pallas_src>
import functools
import math

import jax
import jax.numpy as jnp
from jax.experimental import pallas as pl
from jax.experimental.pallas import tpu as pltpu

D_MODEL = 64
MAX_LEN = 100
_MAX_TILE_S = 2048      # ~1 MiB per f32 buffer at 128 lanes (~85% of HBM roofline)
_SINGLE_TILE_S = 512    # below this, a single grid step (per-step overhead dominates)


def make_positional_encoding(max_len: int, d_model: int) -> jnp.ndarray:
    """Deterministically build the pe buffer, shape (max_len, 1, d_model)."""
    position = jnp.arange(0, max_len, dtype=jnp.float32)[:, None]          # (L, 1)
    div_term = jnp.exp(
        jnp.arange(0, d_model, 2, dtype=jnp.float32) * (-math.log(10000.0) / d_model)
    )                                                                       # (D/2,)
    angles = position * div_term                                            # (L, D/2)
    pe = jnp.zeros((max_len, d_model), dtype=jnp.float32)
    pe = pe.at[:, 0::2].set(jnp.sin(angles))
    pe = pe.at[:, 1::2].set(jnp.cos(angles))
    # unsqueeze(0).transpose(0, 1) -> (max_len, 1, d_model)
    return pe[:, None, :]


@functools.lru_cache(maxsize=None)
def _lane_dense_pe(max_len: int, d_model: int, batch: int, dtype_name: str):
    """Cached (max_len, batch*d_model) pe replica in the compute dtype.

    Built once per (max_len, d_model, batch, dtype); hoisted out of the
    per-call path so the forward pass is a single pallas_call with no extra
    XLA broadcast/materialization.
    """
    pe = make_positional_encoding(max_len, d_model)[:, 0, :]               # (L, D)
    pe2 = jnp.tile(pe, (1, batch)).astype(jnp.dtype(dtype_name))           # (L, B*D)
    return jax.block_until_ready(pe2)


def _pe_add_kernel(x_ref, pe_ref, o_ref):
    # Plain shape-matched elementwise add on lane-dense (tile_s, B*D) blocks,
    # done in the native I/O dtype (no f32 round trip; Mosaic widens on v5e
    # if the dtype is bf16).
    o_ref[...] = x_ref[...] + pe_ref[...]


def positional_encoding_forward(x: jnp.ndarray, *, max_len: int = MAX_LEN) -> jnp.ndarray:
    """Eval-mode forward of PositionalEncoding: x + pe[:S].  x: (S, B, D)."""
    S, B, D = x.shape
    assert S <= max_len, "sequence length exceeds max_len of the pe buffer"

    # Lane-dense packing: flatten (B, D) into one contiguous row of B*D values
    # (B*D = 128 for B=2, D=64 -> full lane occupancy, unmasked stores).
    x2 = x.reshape(S, B * D)

    # Cached pe replica (built once, not per call).
    pe2 = _lane_dense_pe(max_len, D, B, jnp.dtype(x.dtype).name)

    # Sublane-aligned tiling of S.  Single step for small S; >= 2 steps for
    # large S so "parallel" can shard across v7x's two TensorCores, capped at
    # _MAX_TILE_S rows (~1 MiB/buffer f32).
    s_pad8 = max(8, pl.cdiv(S, 8) * 8)
    if s_pad8 <= _SINGLE_TILE_S:
        tile_s = s_pad8
    else:
        tile_s = min(_MAX_TILE_S, pl.cdiv(s_pad8, 2 * 8) * 8)
    grid = (pl.cdiv(S, tile_s),)

    out2 = pl.pallas_call(
        _pe_add_kernel,
        out_shape=jax.ShapeDtypeStruct((S, B * D), x.dtype),
        grid=grid,
        in_specs=[
            pl.BlockSpec((tile_s, B * D), lambda i: (i, 0)),
            # S-window of pe selected by the index_map over the full cached
            # buffer (valid because S <= max_len; no wrapper-side slice).
            pl.BlockSpec((tile_s, B * D), lambda i: (i, 0)),
        ],
        out_specs=pl.BlockSpec((tile_s, B * D), lambda i: (i, 0)),
        # Output has the same shape/dtype as x2 -> let it reuse x2's buffer
        # (full benefit when the caller donates x / x2 is dead after this op).
        input_output_aliases={0: 0},
        compiler_params=pltpu.CompilerParams(
            dimension_semantics=("parallel",),
        ),
    )(x2, pe2)

    return out2.reshape(S, B, D)


if __name__ == "__main__":
    key = jax.random.PRNGKey(0)
    S, B, D = 8, 2, D_MODEL  # small seq/batch, d_model from the module
    x = jax.random.normal(key, (S, B, D), dtype=jnp.float32)

    out = positional_encoding_forward(x)
    out = jax.block_until_ready(out)

    # Reference check in plain JAX (eval-mode dropout == identity).
    pe = make_positional_encoding(MAX_LEN, D_MODEL)
    ref = x + pe[:S]
    assert out.shape == (S, B, D)
    assert jnp.allclose(out, ref, atol=1e-6), "mismatch vs reference"

    print("KERNEL_OK")
</pallas_src>

<mosaic_0001>
module attributes {stable_mosaic.version = 11 : i64} {
  func.func @_pe_add_kernel(%arg0: i32, %arg1: memref<8x128xf32, #tpu.memory_space<vmem>>, %arg2: memref<8x128xf32, #tpu.memory_space<vmem>>, %arg3: memref<8x128xf32, #tpu.memory_space<vmem>>) attributes {dimension_semantics = [#tpu.dimension_semantics<parallel>], iteration_bounds = array<i64: 1>, scalar_prefetch = 0 : i64, scratch_operands = 0 : i64, tpu.core_type = #tpu.core_type<tc>, window_params = [{transform_indices = @transform_0, window_bounds = array<i64: 8, 128>}, {transform_indices = @transform_1, window_bounds = array<i64: 8, 128>}, {transform_indices = @transform_2, window_bounds = array<i64: 8, 128>}]} {
    %c0 = arith.constant 0 : index
    %c0_0 = arith.constant 0 : index
    %0 = vector.load %arg1[%c0, %c0_0] : memref<8x128xf32, #tpu.memory_space<vmem>>, vector<8x128xf32>
    %c0_1 = arith.constant 0 : index
    %c0_2 = arith.constant 0 : index
    %1 = vector.load %arg2[%c0_1, %c0_2] : memref<8x128xf32, #tpu.memory_space<vmem>>, vector<8x128xf32>
    %2 = arith.addf %0, %1 : vector<8x128xf32>
    %c0_3 = arith.constant 0 : index
    %c0_4 = arith.constant 0 : index
    %3 = vector.load %arg3[%c0_3, %c0_4] : memref<8x128xf32, #tpu.memory_space<vmem>>, vector<8x128xf32>
    tpu.vector_store %arg3[%c0_3, %c0_4], %2 {strides = array<i32>} : memref<8x128xf32, #tpu.memory_space<vmem>>, vector<8x128xf32>,
    return
  }
  func.func @transform_0(%arg0: i32) -> (i32, i32) {
    %c0_i32 = arith.constant 0 : i32
    %c0_i32_0 = arith.constant 0 : i32
    return %arg0, %c0_i32 : i32, i32
  }
  func.func @transform_1(%arg0: i32) -> (i32, i32) {
    %c0_i32 = arith.constant 0 : i32
    %c0_i32_0 = arith.constant 0 : i32
    return %arg0, %c0_i32 : i32, i32
  }
  func.func @transform_2(%arg0: i32) -> (i32, i32) {
    %c0_i32 = arith.constant 0 : i32
    %c0_i32_0 = arith.constant 0 : i32
    return %arg0, %c0_i32 : i32, i32
  }
}

</mosaic_0001>

<llo_original>
// kernel: tpu_custom_call.1
$region0: #{tpu_custom_call.1}
  #allocation0 [shape = 'u32[]', space=smem, size = 0x4, offset = 0x4, fixed_abs, tag = 'smem constant byte address 0x4 - core index']
  #allocation1 [shape = 'u32[72,128]{1,0:T(1,128)}', space=vmem, size = 0x9000, scoped, tag = 'internal scratch']
  %s0 = inlined_call_operand.hbm [shape: f32[8,128], index: 0, kind: input, shape index: {}, may-alias: {0,2}]
  %s1 = inlined_call_operand.hbm [shape: f32[100,128], index: 1, kind: input, shape index: {}]
  %s2 = inlined_call_operand.hbm [shape: f32[8,128], index: 2, kind: output, shape index: {}, may-alias: {0,2}]
  %s3 = sld [smem:[#allocation0]]
  $region26: #{tpu_custom_call.1} parent=0
    _
  %s5 = ssub.s32 1, %s3
  %s6 = scalar_select 0, %s5, %s3
  $region1: #{tpu_custom_call.1} parent=0
    #allocation2 [shape = 'u8[4096]{0}', space=vmem, size = 0x1000, scoped, tag = 'input window, operand 0, single buffered']
    #allocation3 [shape = 's32[1]{0}', space=sflag, size = 0x4, scoped, tag = 'scoped memory for tpu_custom_call.1']
    #allocation4 [shape = 's32[1]{0}', space=sflag, size = 0x4, scoped, tag = 'scoped memory for tpu_custom_call.1']
    #allocation5 [shape = 'u8[4096]{0}', space=vmem, size = 0x1000, scoped, tag = 'input window, operand 1, single buffered']
    #allocation6 [shape = 's32[1]{0}', space=sflag, size = 0x4, scoped, tag = 'scoped memory for tpu_custom_call.1']
    #allocation7 [shape = 'u8[4096]{0}', space=vmem, size = 0x1000, scoped, tag = 'output window, operand 0, single buffered']
    %7 = vsyncpa [#allocation3], 0
    %8 = vsyncpa [#allocation6], 0
    %9 = vsyncpa [#allocation4], 0
    // Predicated region
    $region2: #{tpu_custom_call.1} parent=1 // pred_check
      _
    $region3: #{tpu_custom_call.1} parent=1 // pred_check_branch
      %11 = sbr.rel (0) target = $region5
    $region4: #{tpu_custom_call.1} parent=1 // pred_region
      %13 = vsyncadd [#allocation3], 0
      %s15 = sshll.u32 %s0, 4
      %s16 = int_to_ptr.hbm [resolvable:$true] %s15
      %s17 = sshll.u32 [#allocation2], 4
      %s18 = int_to_ptr.vmem [resolvable:$true] %s17
      %20 = dma.hbm_to_vmem [thread:$0]  %s16, 128, %s18, [#allocation3]
    $region5: #{tpu_custom_call.1} parent=1 // pred_fallthru
      _
    // Predicated region
    $region6: #{tpu_custom_call.1} parent=1 // pred_check
      _
    $region7: #{tpu_custom_call.1} parent=1 // pred_check_branch
      %22 = sbr.rel (0) target = $region9
    $region8: #{tpu_custom_call.1} parent=1 // pred_region
      %24 = vsyncadd [#allocation6], 0
      %s26 = sshll.u32 %s1, 4
      %s27 = int_to_ptr.hbm [resolvable:$true] %s26
      %s28 = sshll.u32 [#allocation5], 4
      %s29 = int_to_ptr.vmem [resolvable:$true] %s28
      %31 = dma.hbm_to_vmem [thread:$0]  %s27, 128, %s29, [#allocation6]
    $region9: #{tpu_custom_call.1} parent=1 // pred_fallthru
      _
    // Predicated region
    $region10: #{tpu_custom_call.1} parent=1 // pred_check
      _
    $region11: #{tpu_custom_call.1} parent=1 // pred_check_branch
      %33 = sbr.rel (0) target = $region13
    $region12: #{tpu_custom_call.1} parent=1 // pred_region
      %35 = dma.done [#allocation3], 128
    $region13: #{tpu_custom_call.1} parent=1 // pred_fallthru
      _
    // Predicated region
    $region14: #{tpu_custom_call.1} parent=1 // pred_check
      _
    $region15: #{tpu_custom_call.1} parent=1 // pred_check_branch
      %37 = sbr.rel (0) target = $region17
    $region16: #{tpu_custom_call.1} parent=1 // pred_region
      %39 = dma.done [#allocation6], 128
    $region17: #{tpu_custom_call.1} parent=1 // pred_fallthru
      _
    %v40 = vld [vmem:[#allocation2] sm:$0xff]
    %v41 = vld [vmem:[#allocation5] sm:$0xff]
    %v42 = vadd.f32 %v40, %v41
    %43 = vst [vmem:[#allocation7] sm:$0xff] %v42
    // Predicated region
    $region18: #{tpu_custom_call.1} parent=1 // pred_check
      _
    $region19: #{tpu_custom_call.1} parent=1 // pred_check_branch
      %45 = sbr.rel (0) target = $region21
    $region20: #{tpu_custom_call.1} parent=1 // pred_region
      %47 = vsyncadd [#allocation4], 0
      %s49 = sshll.u32 [#allocation7], 4
      %s50 = int_to_ptr.vmem [resolvable:$true] %s49
      %s51 = sshll.u32 %s2, 4
      %s52 = int_to_ptr.hbm [resolvable:$true] %s51
      %54 = dma.vmem_to_hbm [thread:$0]  %s50, 128, %s52, [#allocation4]
    $region21: #{tpu_custom_call.1} parent=1 // pred_fallthru
      _
    // Predicated region
    $region22: #{tpu_custom_call.1} parent=1 // pred_check
      _
    $region23: #{tpu_custom_call.1} parent=1 // pred_check_branch
      %56 = sbr.rel (0) target = $region25
    $region24: #{tpu_custom_call.1} parent=1 // pred_region
      %58 = dma.done [#allocation4], 128
    $region25: #{tpu_custom_call.1} parent=1 // pred_fallthru
      _
    %59 = vsyncpa [#allocation3], 1
    %60 = vsyncpa [#allocation6], 1
    %61 = vsyncpa [#allocation4], 1

</llo_original>
